<compile_context>
chip_gen: v5e
topology: v5e:2x2
jax: 0.10.0
libtpu: 0.0.40
codegen_flags: <defaults>
</compile_context>

<pallas_src>
import functools

import jax
import jax.numpy as jnp
import numpy as np
from jax.experimental import pallas as pl
from jax.experimental.pallas import tpu as pltpu


def odefunc_kernel(y_ref, e_ref, wcat1_ref, b1_ref, wcat2_ref, b2_ref, out_ref,
                   *, bt, D, H):
    """One batch tile: fused diffeq forward + analytic VJP + reductions.

    y_ref, e_ref        : (bt, D)   f32
    wcat1_ref           : (D, 2H)   bf16   = [W1 | W2^T]
    b1_ref              : (1, H)    f32    = b1 + t
    wcat2_ref           : (H, 2D)   bf16   = [W2 | W1^T]
    b2_ref              : (1, D)    f32
    out_ref             : (bt, OUT_W) f32  packed [dy | -div | sqjac | 0...]
    """
    y = y_ref[...]                                   # (bt, D) f32
    e = e_ref[...]                                   # (bt, D) f32

    # ---- fused MXU pass 1:  [y; e] @ [W1 | W2^T]  -> (2bt, 2H) f32 acc ----
    ye = jnp.concatenate([y, e], axis=0).astype(jnp.bfloat16)       # (2bt, D)
    f1 = jnp.dot(ye, wcat1_ref[...], preferred_element_type=jnp.float32)

    z = f1[:bt, :H] + b1_ref[...]                    # y @ W1 + (b1 + t)
    gp = f1[bt:, H:]                                 # e @ W2^T

    # elementwise / transcendental math kept in f32 (no bf16 VPU/EUP on v5e)
    h = jnp.tanh(z)                                  # (bt, H) f32
    g = gp * (1.0 - h * h)                           # (bt, H) f32

    # ---- fused MXU pass 2:  [h; g] @ [W2 | W1^T]  -> (2bt, 2D) f32 acc ----
    hg = jnp.concatenate([h, g], axis=0).astype(jnp.bfloat16)       # (2bt, H)
    f2 = jnp.dot(hg, wcat2_ref[...], preferred_element_type=jnp.float32)

    dy = f2[:bt, :D] + b2_ref[...]                   # diffeq output
    vjp = f2[bt:, D:]                                # e^T J

    # ---- Hutchinson divergence estimate + squared-Jacobian-norm ----
    div = jnp.sum(vjp * e, axis=1, keepdims=True)    # (bt, 1)
    sqn = jnp.mean(vjp * vjp, axis=1, keepdims=True)  # (bt, 1)

    # ---- single lane-dense packed output slab ----
    OUT_W = out_ref.shape[1]
    out_ref[:, :D] = dy.astype(out_ref.dtype)
    out_ref[:, D:D + 1] = (-div).astype(out_ref.dtype)
    out_ref[:, D + 1:D + 2] = sqn.astype(out_ref.dtype)
    if D + 2 < OUT_W:  # deterministic zero pad for the unused lanes
        out_ref[:, D + 2:] = jnp.zeros((bt, OUT_W - (D + 2)), out_ref.dtype)


def odefunc_forward(t, states, e, w1, b1, w2, b2, *, block_b=None):
    """Pallas equivalent of ODEfunc.forward(t, states).

    states = (y, logp, *extras). Returns ((dy, -divergence, zeros_like(extras)...),
    sqjacnorm) — the PyTorch module stashes sqjacnorm as self.sqjacnorm.
    """
    y = states[0]
    B, D = y.shape
    H = w1.shape[1]
    OUT_W = pl.cdiv(D + 2, 128) * 128                # lane-dense packed width

    # --- batch tile choice (keep the largest tile that evenly divides B) ---
    if block_b is None:
        block_b = min(B, 1024)
    if B % block_b != 0 or (block_b % 8 != 0 and block_b != B):
        # TODO(synk): pad the batch for ragged tiling instead of falling back.
        block_b = B
    grid = (B // block_b,)

    # --- hoisted per-call preprocessing (weights are reused every ODE step) ---
    b1_eff = (b1.astype(jnp.float32) + jnp.asarray(t, jnp.float32)).reshape(1, H)
    b2_f = b2.astype(jnp.float32).reshape(1, D)
    wcat1 = jnp.concatenate([w1, w2.T], axis=1).astype(jnp.bfloat16)   # (D, 2H)
    wcat2 = jnp.concatenate([w2, w1.T], axis=1).astype(jnp.bfloat16)   # (H, 2D)

    kernel = functools.partial(odefunc_kernel, bt=block_b, D=D, H=H)

    packed = pl.pallas_call(
        kernel,
        out_shape=jax.ShapeDtypeStruct((B, OUT_W), jnp.float32),
        grid=grid,
        in_specs=[
            pl.BlockSpec((block_b, D), lambda i: (i, 0)),   # y   (streamed)
            pl.BlockSpec((block_b, D), lambda i: (i, 0)),   # e   (streamed)
            pl.BlockSpec((D, 2 * H), lambda i: (0, 0)),     # [W1 | W2^T] resident
            pl.BlockSpec((1, H), lambda i: (0, 0)),         # b1 + t      resident
            pl.BlockSpec((H, 2 * D), lambda i: (0, 0)),     # [W2 | W1^T] resident
            pl.BlockSpec((1, D), lambda i: (0, 0)),         # b2          resident
        ],
        out_specs=pl.BlockSpec((block_b, OUT_W), lambda i: (i, 0)),
        compiler_params=pltpu.CompilerParams(
            dimension_semantics=("parallel",)),             # megacore on v7x
    )(y, e, wcat1, b1_eff, wcat2, b2_f)

    dy = packed[:, :D].astype(y.dtype)
    negdiv = packed[:, D:D + 1].astype(y.dtype)
    sqjac = packed[:, D + 1:D + 2].astype(y.dtype)

    extras = tuple(jnp.zeros_like(s) for s in states[2:])
    return (dy, negdiv) + extras, sqjac


# ---- pure-JAX reference (mirrors the torch autograd path, full f32) ----
def _diffeq_ref(t, y, w1, b1, w2, b2):
    z = y @ w1 + b1 + t
    return jnp.tanh(z) @ w2 + b2


def _reference(t, y, e, w1, b1, w2, b2):
    dy, vjp_fn = jax.vjp(lambda yy: _diffeq_ref(t, yy, w1, b1, w2, b2), y)
    e_dzdx = vjp_fn(e)[0]                                      # e^T J
    div = jnp.sum(e_dzdx * e, axis=1, keepdims=True)           # divergence_approx sample
    sqn = jnp.mean(e_dzdx ** 2, axis=1, keepdims=True)         # sqjacnorm
    return dy, -div, sqn


if __name__ == "__main__":
    B, D, H = 64, 64, 128
    key = jax.random.PRNGKey(0)
    k_y, k_e, k_w1, k_w2, k_b1, k_b2 = jax.random.split(key, 6)

    y = jax.random.normal(k_y, (B, D), dtype=jnp.float32)
    logp = jnp.zeros((B, 1), dtype=jnp.float32)
    extra = jnp.zeros((B, 3), dtype=jnp.float32)     # an extra state (e.g. reg. accumulator)
    states = (y, logp, extra)

    # _e: one gaussian probe (sample_gaussian_like, div_samples=1)
    e = jax.random.normal(k_e, (B, D), dtype=jnp.float32)

    # deterministic synthetic diffeq parameters
    w1 = jax.random.normal(k_w1, (D, H), dtype=jnp.float32) * (1.0 / np.sqrt(D))
    b1 = jax.random.normal(k_b1, (1, H), dtype=jnp.float32) * 0.1
    w2 = jax.random.normal(k_w2, (H, D), dtype=jnp.float32) * (1.0 / np.sqrt(H))
    b2 = jax.random.normal(k_b2, (1, D), dtype=jnp.float32) * 0.1

    t = 0.3

    # block_b=16 -> grid=(4,) exercises the pipelined batch loop + resident weights.
    (dy, negdiv, extra_out), sqjac = odefunc_forward(
        t, states, e, w1, b1, w2, b2, block_b=16)
    jax.block_until_ready((dy, negdiv, extra_out, sqjac))

    dy_ref, negdiv_ref, sqjac_ref = _reference(jnp.float32(t), y, e, w1, b1, w2, b2)
    # Tolerances loosened vs the f32 reference because matmul operands are bf16
    # (f32 accumulation) inside the kernel.
    np.testing.assert_allclose(np.asarray(dy), np.asarray(dy_ref), rtol=5e-2, atol=5e-2)
    np.testing.assert_allclose(np.asarray(negdiv), np.asarray(negdiv_ref), rtol=5e-2, atol=2.5e-1)
    np.testing.assert_allclose(np.asarray(sqjac), np.asarray(sqjac_ref), rtol=5e-2, atol=5e-2)
    assert np.all(np.asarray(extra_out) == 0.0)

    print("KERNEL_OK")
</pallas_src>

<mosaic_0001>
module attributes {stable_mosaic.version = 11 : i64} {
  func.func @odefunc_kernel(%arg0: i32, %arg1: memref<16x64xf32, #tpu.memory_space<vmem>>, %arg2: memref<16x64xf32, #tpu.memory_space<vmem>>, %arg3: memref<64x256xbf16, #tpu.memory_space<vmem>>, %arg4: memref<1x128xf32, #tpu.memory_space<vmem>>, %arg5: memref<128x128xbf16, #tpu.memory_space<vmem>>, %arg6: memref<1x64xf32, #tpu.memory_space<vmem>>, %arg7: memref<16x128xf32, #tpu.memory_space<vmem>>) attributes {dimension_semantics = [#tpu.dimension_semantics<parallel>], iteration_bounds = array<i64: 4>, scalar_prefetch = 0 : i64, scratch_operands = 0 : i64, tpu.core_type = #tpu.core_type<tc>, window_params = [{transform_indices = @transform_0, window_bounds = array<i64: 16, 64>}, {transform_indices = @transform_1, window_bounds = array<i64: 16, 64>}, {pipeline_mode = #tpu.pipeline_mode<synchronous>, transform_indices = @transform_2, window_bounds = array<i64: 64, 256>}, {pipeline_mode = #tpu.pipeline_mode<synchronous>, transform_indices = @transform_3, window_bounds = array<i64: 1, 128>}, {pipeline_mode = #tpu.pipeline_mode<synchronous>, transform_indices = @transform_4, window_bounds = array<i64: 128, 128>}, {pipeline_mode = #tpu.pipeline_mode<synchronous>, transform_indices = @transform_5, window_bounds = array<i64: 1, 64>}, {transform_indices = @transform_6, window_bounds = array<i64: 16, 128>}]} {
    %c0 = arith.constant 0 : index
    %c0_0 = arith.constant 0 : index
    %0 = vector.load %arg1[%c0, %c0_0] : memref<16x64xf32, #tpu.memory_space<vmem>>, vector<16x64xf32>
    %c0_1 = arith.constant 0 : index
    %c0_2 = arith.constant 0 : index
    %1 = vector.load %arg2[%c0_1, %c0_2] : memref<16x64xf32, #tpu.memory_space<vmem>>, vector<16x64xf32>
    %2 = tpu.concatenate %0, %1 in 0 : vector<16x64xf32>, vector<16x64xf32> -> vector<32x64xf32>
    %3 = arith.truncf %2 : vector<32x64xf32> to vector<32x64xbf16>
    %c0_3 = arith.constant 0 : index
    %c0_4 = arith.constant 0 : index
    %4 = vector.load %arg3[%c0_3, %c0_4] : memref<64x256xbf16, #tpu.memory_space<vmem>>, vector<64x256xbf16>
    %cst = arith.constant dense<0.000000e+00> : vector<32x256xf32>
    %5 = tpu.matmul %3, %4, %cst {dimension_numbers = #tpu.dot_dimension_numbers<[1], [0], [0], [1], [0, 0, 1, 1], [], []>} : vector<32x64xbf16>, vector<64x256xbf16>, vector<32x256xf32> -> vector<32x256xf32>
    %6 = vector.extract_strided_slice %5 {offsets = [0, 0], sizes = [16, 128], strides = [1, 1]} : vector<32x256xf32> to vector<16x128xf32>
    %c0_5 = arith.constant 0 : index
    %c0_6 = arith.constant 0 : index
    %7 = vector.load %arg4[%c0_5, %c0_6] : memref<1x128xf32, #tpu.memory_space<vmem>>, vector<1x128xf32>
    %8 = vector.broadcast %7 : vector<1x128xf32> to vector<16x128xf32>
    %9 = arith.addf %6, %8 : vector<16x128xf32>
    %10 = vector.extract_strided_slice %5 {offsets = [16, 128], sizes = [16, 128], strides = [1, 1]} : vector<32x256xf32> to vector<16x128xf32>
    %11 = math.tanh %9 : vector<16x128xf32>
    %12 = arith.mulf %11, %11 : vector<16x128xf32>
    %cst_7 = arith.constant 1.000000e+00 : f32
    %13 = vector.broadcast %cst_7 : f32 to vector<16x128xf32>
    %14 = arith.subf %13, %12 : vector<16x128xf32>
    %15 = arith.mulf %10, %14 : vector<16x128xf32>
    %16 = tpu.concatenate %11, %15 in 0 : vector<16x128xf32>, vector<16x128xf32> -> vector<32x128xf32>
    %17 = arith.truncf %16 : vector<32x128xf32> to vector<32x128xbf16>
    %c0_8 = arith.constant 0 : index
    %c0_9 = arith.constant 0 : index
    %18 = vector.load %arg5[%c0_8, %c0_9] : memref<128x128xbf16, #tpu.memory_space<vmem>>, vector<128x128xbf16>
    %cst_10 = arith.constant dense<0.000000e+00> : vector<32x128xf32>
    %19 = tpu.matmul %17, %18, %cst_10 {dimension_numbers = #tpu.dot_dimension_numbers<[1], [0], [0], [1], [0, 0, 1, 1], [], []>} : vector<32x128xbf16>, vector<128x128xbf16>, vector<32x128xf32> -> vector<32x128xf32>
    %20 = vector.extract_strided_slice %19 {offsets = [0, 0], sizes = [16, 64], strides = [1, 1]} : vector<32x128xf32> to vector<16x64xf32>
    %c0_11 = arith.constant 0 : index
    %c0_12 = arith.constant 0 : index
    %21 = vector.load %arg6[%c0_11, %c0_12] : memref<1x64xf32, #tpu.memory_space<vmem>>, vector<1x64xf32>
    %22 = vector.broadcast %21 : vector<1x64xf32> to vector<16x64xf32>
    %23 = arith.addf %20, %22 : vector<16x64xf32>
    %24 = vector.extract_strided_slice %19 {offsets = [16, 64], sizes = [16, 64], strides = [1, 1]} : vector<32x128xf32> to vector<16x64xf32>
    %25 = arith.mulf %24, %1 : vector<16x64xf32>
    %cst_13 = arith.constant dense<0.000000e+00> : vector<16xf32>
    %26 = vector.multi_reduction <add>, %25, %cst_13 [1] : vector<16x64xf32> to vector<16xf32>
    %27 = vector.shape_cast %26 : vector<16xf32> to vector<16x1xf32>
    %28 = arith.mulf %24, %24 : vector<16x64xf32>
    %cst_14 = arith.constant dense<0.000000e+00> : vector<16xf32>
    %29 = vector.multi_reduction <add>, %28, %cst_14 [1] : vector<16x64xf32> to vector<16xf32>
    %30 = vector.shape_cast %29 : vector<16xf32> to vector<16x1xf32>
    %cst_15 = arith.constant 6.400000e+01 : f32
    %31 = vector.broadcast %cst_15 : f32 to vector<16x1xf32>
    %32 = arith.divf %30, %31 : vector<16x1xf32>
    %c0_16 = arith.constant 0 : index
    %c0_17 = arith.constant 0 : index
    %33 = vector.load %arg7[%c0_16, %c0_17] : memref<16x128xf32, #tpu.memory_space<vmem>>, vector<16x64xf32>
    tpu.vector_store %arg7[%c0_16, %c0_17], %23 {strides = array<i32>} : memref<16x128xf32, #tpu.memory_space<vmem>>, vector<16x64xf32>,
    %cst_18 = arith.constant 0.000000e+00 : f32
    %34 = vector.broadcast %cst_18 : f32 to vector<16x1xf32>
    %35 = arith.subf %34, %27 : vector<16x1xf32>
    %c0_19 = arith.constant 0 : index
    %c64 = arith.constant 64 : index
    %36 = vector.load %arg7[%c0_19, %c64] : memref<16x128xf32, #tpu.memory_space<vmem>>, vector<16x1xf32>
    tpu.vector_store %arg7[%c0_19, %c64], %35 {strides = array<i32>} : memref<16x128xf32, #tpu.memory_space<vmem>>, vector<16x1xf32>,
    %c0_20 = arith.constant 0 : index
    %c65 = arith.constant 65 : index
    %37 = vector.load %arg7[%c0_20, %c65] : memref<16x128xf32, #tpu.memory_space<vmem>>, vector<16x1xf32>
    tpu.vector_store %arg7[%c0_20, %c65], %32 {strides = array<i32>} : memref<16x128xf32, #tpu.memory_space<vmem>>, vector<16x1xf32>,
    %cst_21 = arith.constant 0.000000e+00 : f32
    %38 = vector.broadcast %cst_21 : f32 to vector<16x62xf32>
    %c0_22 = arith.constant 0 : index
    %c66 = arith.constant 66 : index
    %39 = vector.load %arg7[%c0_22, %c66] : memref<16x128xf32, #tpu.memory_space<vmem>>, vector<16x62xf32>
    tpu.vector_store %arg7[%c0_22, %c66], %38 {strides = array<i32>} : memref<16x128xf32, #tpu.memory_space<vmem>>, vector<16x62xf32>,
    return
  }
  func.func @transform_0(%arg0: i32) -> (i32, i32) {
    %c0_i32 = arith.constant 0 : i32
    %c0_i32_0 = arith.constant 0 : i32
    return %arg0, %c0_i32 : i32, i32
  }
  func.func @transform_1(%arg0: i32) -> (i32, i32) {
    %c0_i32 = arith.constant 0 : i32
    %c0_i32_0 = arith.constant 0 : i32
    return %arg0, %c0_i32 : i32, i32
  }
  func.func @transform_2(%arg0: i32) -> (i32, i32) {
    %c0_i32 = arith.constant 0 : i32
    %c0_i32_0 = arith.constant 0 : i32
    %c0_i32_1 = arith.constant 0 : i32
    return %c0_i32, %c0_i32_0 : i32, i32
  }
  func.func @transform_3(%arg0: i32) -> (i32, i32) {
    %c0_i32 = arith.constant 0 : i32
    %c0_i32_0 = arith.constant 0 : i32
    %c0_i32_1 = arith.constant 0 : i32
    return %c0_i32, %c0_i32_0 : i32, i32
  }
  func.func @transform_4(%arg0: i32) -> (i32, i32) {
    %c0_i32 = arith.constant 0 : i32
    %c0_i32_0 = arith.constant 0 : i32
    %c0_i32_1 = arith.constant 0 : i32
    return %c0_i32, %c0_i32_0 : i32, i32
  }
  func.func @transform_5(%arg0: i32) -> (i32, i32) {
    %c0_i32 = arith.constant 0 : i32
    %c0_i32_0 = arith.constant 0 : i32
    %c0_i32_1 = arith.constant 0 : i32
    return %c0_i32, %c0_i32_0 : i32, i32
  }
  func.func @transform_6(%arg0: i32) -> (i32, i32) {
    %c0_i32 = arith.constant 0 : i32
    %c0_i32_0 = arith.constant 0 : i32
    return %arg0, %c0_i32 : i32, i32
  }
}

</mosaic_0001>

<llo_original>
// kernel: tpu_custom_call.1
$region0: #{tpu_custom_call.1}
  #allocation0 [shape = 'u32[]', space=smem, size = 0x4, offset = 0x4, fixed_abs, tag = 'smem constant byte address 0x4 - core index']
  #allocation1 [shape = 'u32[72,128]{1,0:T(1,128)}', space=vmem, size = 0x9000, scoped, tag = 'internal scratch']
  %s0 = inlined_call_operand.hbm [shape: f32[64,64], index: 0, kind: input, shape index: {}]
  %s1 = inlined_call_operand.hbm [shape: f32[64,64], index: 1, kind: input, shape index: {}]
  %s2 = inlined_call_operand.hbm [shape: bf16[64,256], index: 2, kind: input, shape index: {}]
  %s3 = inlined_call_operand.vmem [shape: f32[1,128], index: 3, kind: input, shape index: {}]
  %s4 = inlined_call_operand.hbm [shape: bf16[128,128], index: 4, kind: input, shape index: {}]
  %s5 = inlined_call_operand.vmem [shape: f32[1,64], index: 5, kind: input, shape index: {}]
  %s6 = inlined_call_operand.hbm [shape: f32[64,128], index: 6, kind: output, shape index: {}]
  %s7 = sld [smem:[#allocation0]]
  $region73: #{tpu_custom_call.1} parent=0
    _
  %s9 = ssub.s32 1, %s7
  %s10 = scalar_select 0, %s9, %s7
  $region1: #{tpu_custom_call.1} parent=0
    #allocation2 [shape = 'u8[16384]{0}', space=vmem, size = 0x4000, scoped, tag = 'input window, operand 0']
    #allocation3 [shape = 's32[2]{0}', space=sflag, size = 0x8, scoped, tag = 'scoped memory for tpu_custom_call.1']
    #allocation4 [shape = 's32[2]{0}', space=sflag, size = 0x8, scoped, tag = 'scoped memory for tpu_custom_call.1']
    #allocation5 [shape = 'u8[16384]{0}', space=vmem, size = 0x4000, scoped, tag = 'input window, operand 1']
    #allocation6 [shape = 's32[2]{0}', space=sflag, size = 0x8, scoped, tag = 'scoped memory for tpu_custom_call.1']
    #allocation7 [shape = 'u8[32768]{0}', space=vmem, size = 0x8000, scoped, tag = 'input window, operand 2, single buffered']
    #allocation8 [shape = 'u8[32768]{0}', space=vmem, size = 0x8000, scoped, tag = 'input window, operand 4, single buffered']
    #allocation9 [shape = 's32[1]{0}', space=sflag, size = 0x4, scoped, tag = 'scoped memory for tpu_custom_call.1']
    #allocation10 [shape = 'u8[16384]{0}', space=vmem, size = 0x4000, scoped, tag = 'output window, operand 0']
    %11 = vsyncpa [#allocation3], 0
    %s12 = scalar_lea.sflag [#allocation3], 1
    %13 = vsyncpa %s12, 0
    %14 = vsyncpa [#allocation6], 0
    %s15 = scalar_lea.sflag [#allocation6], 1
    %16 = vsyncpa %s15, 0
    %17 = vsyncpa [#allocation9], 0
    %18 = vsyncpa [#allocation4], 0
    %s19 = scalar_lea.sflag [#allocation4], 1
    %20 = vsyncpa %s19, 0
    loop: start=0, step=1, limit=6
    $region2: #{tpu_custom_call.1} parent=1 // loop_pre_header
      _
    $region3: #{tpu_custom_call.1} parent=1 // loop_header
      %s22 = sphi 0, %s26
      %p23 = scmp.ge.s32.totalorder %s22, 6
      %s32 = sphi 0, %s34
      %s35 = sphi 0, %s32
      %s36 = sphi 0, %s35
      %s52 = sphi 0, %s36
      %s58 = sphi 0, %s60
      %s61 = sphi 0, %s58
      %s62 = sphi 0, %s61
      %s78 = sphi 0, %s62
      %s82 = sphi 0, %s82
      %s84 = sphi 0, %s82
      %s85 = sphi 0, %s84
      %s99 = sphi 0, %s85
      %s103 = sphi 0, %s103
      %s105 = sphi 0, %s103
      %s106 = sphi 0, %s105
      %s120 = sphi 0, %s106
      %s124 = sphi 0, %s124
      %s126 = sphi 0, %s124
      %s127 = sphi 0, %s126
      %s141 = sphi 0, %s127
      %s145 = sphi 0, %s145
      %s147 = sphi 0, %s145
      %s148 = sphi 0, %s147
      %s162 = sphi 0, %s148
      %s168 = sphi 0, %s170
      %s171 = sphi 0, %s168
      %s172 = sphi 0, %s171
      %s188 = sphi 0, %s172
    $region4: #{tpu_custom_call.1} parent=1 // loop_header_branch
      %25 = sbr.rel (%p23) target = $region8
    $region5: #{tpu_custom_call.1} parent=1 // loop_body
      %s27 = ssub.s32 %s22, 1
      %s28 = ssub.s32 %s22, 2
      %s29 = sadd.s32 %s22, 1
      %s30 = ssub.s32 %s22, %s29
      %p31 = scmp.eq.s32.totalorder %s30, 0
      %s33 = sadd.s32 %s32, 1
      %s34 = scalar_select %p31, %s32, %s33
      %p37 = pneg %p31
      %p38 = scmp.eq.s32.totalorder %s22, 3
      %p39 = por %p37, %p38
      %p40 = scmp.ne.s32.totalorder %s32, %s35
      %p41 = scmp.eq.s32.totalorder %s22, 0
      %p42 = por %p40, %p41
      %p43 = scmp.ne.s32.totalorder %s32, %s35
      %p44 = scmp.eq.s32.totalorder %s27, 3
      %p45 = por %p43, %p44
      %p46 = scmp.ne.s32.totalorder %s35, %s36
      %p47 = scmp.eq.s32.totalorder %s27, 0
      %p48 = por %p46, %p47
      %p49 = scmp.ne.s32.totalorder %s35, %s36
      %p50 = scmp.eq.s32.totalorder %s28, 3
      %p51 = por %p49, %p50
      %p53 = scmp.ne.s32.totalorder %s36, %s52
      %p54 = scmp.eq.s32.totalorder %s28, 0
      %p55 = por %p53, %p54
      %s56 = ssub.s32 %s22, %s29
      %p57 = scmp.eq.s32.totalorder %s56, 0
      %s59 = sadd.s32 %s58, 1
      %s60 = scalar_select %p57, %s58, %s59
      %p63 = pneg %p57
      %p64 = scmp.eq.s32.totalorder %s22, 3
      %p65 = por %p63, %p64
      %p66 = scmp.ne.s32.totalorder %s58, %s61
      %p67 = scmp.eq.s32.totalorder %s22, 0
      %p68 = por %p66, %p67
      %p69 = scmp.ne.s32.totalorder %s58, %s61
      %p70 = scmp.eq.s32.totalorder %s27, 3
      %p71 = por %p69, %p70
      %p72 = scmp.ne.s32.totalorder %s61, %s62
      %p73 = scmp.eq.s32.totalorder %s27, 0
      %p74 = por %p72, %p73
      %p75 = scmp.ne.s32.totalorder %s61, %s62
      %p76 = scmp.eq.s32.totalorder %s28, 3
      %p77 = por %p75, %p76
      %p79 = scmp.ne.s32.totalorder %s62, %s78
      %p80 = scmp.eq.s32.totalorder %s28, 0
      %p81 = por %p79, %p80
      %s83 = sadd.s32 %s82, 1
      %p86 = scmp.eq.s32.totalorder %s22, 3
      %p87 = scmp.ne.s32.totalorder %s82, %s84
      %p88 = scmp.eq.s32.totalorder %s22, 0
      %p89 = por %p87, %p88
      %p90 = scmp.ne.s32.totalorder %s82, %s84
      %p91 = scmp.eq.s32.totalorder %s27, 3
      %p92 = por %p90, %p91
      %p93 = scmp.ne.s32.totalorder %s84, %s85
      %p94 = scmp.eq.s32.totalorder %s27, 0
      %p95 = por %p93, %p94
      %p96 = scmp.ne.s32.totalorder %s84, %s85
      %p97 = scmp.eq.s32.totalorder %s28, 3
      %p98 = por %p96, %p97
      %p100 = scmp.ne.s32.totalorder %s85, %s99
      %p101 = scmp.eq.s32.totalorder %s28, 0
      %p102 = por %p100, %p101
      %s104 = sadd.s32 %s103, 1
      %p107 = scmp.eq.s32.totalorder %s22, 3
      %p108 = scmp.ne.s32.totalorder %s103, %s105
      %p109 = scmp.eq.s32.totalorder %s22, 0
      %p110 = por %p108, %p109
      %p111 = scmp.ne.s32.totalorder %s103, %s105
      %p112 = scmp.eq.s32.totalorder %s27, 3
      %p113 = por %p111, %p112
      %p114 = scmp.ne.s32.totalorder %s105, %s106
      %p115 = scmp.eq.s32.totalorder %s27, 0
      %p116 = por %p114, %p115
      %p117 = scmp.ne.s32.totalorder %s105, %s106
      %p118 = scmp.eq.s32.totalorder %s28, 3
      %p119 = por %p117, %p118
      %p121 = scmp.ne.s32.totalorder %s106, %s120
      %p122 = scmp.eq.s32.totalorder %s28, 0
      %p123 = por %p121, %p122
      %s125 = sadd.s32 %s124, 1
      %p128 = scmp.eq.s32.totalorder %s22, 3
      %p129 = scmp.ne.s32.totalorder %s124, %s126
      %p130 = scmp.eq.s32.totalorder %s22, 0
      %p131 = por %p129, %p130
      %p132 = scmp.ne.s32.totalorder %s124, %s126
      %p133 = scmp.eq.s32.totalorder %s27, 3
      %p134 = por %p132, %p133
      %p135 = scmp.ne.s32.totalorder %s126, %s127
      %p136 = scmp.eq.s32.totalorder %s27, 0
      %p137 = por %p135, %p136
      %p138 = scmp.ne.s32.totalorder %s126, %s127
      %p139 = scmp.eq.s32.totalorder %s28, 3
      %p140 = por %p138, %p139
      %p142 = scmp.ne.s32.totalorder %s127, %s141
      %p143 = scmp.eq.s32.totalorder %s28, 0
      %p144 = por %p142, %p143
      %s146 = sadd.s32 %s145, 1
      %p149 = scmp.eq.s32.totalorder %s22, 3
      %p150 = scmp.ne.s32.totalorder %s145, %s147
      %p151 = scmp.eq.s32.totalorder %s22, 0
      %p152 = por %p150, %p151
      %p153 = scmp.ne.s32.totalorder %s145, %s147
      %p154 = scmp.eq.s32.totalorder %s27, 3
      %p155 = por %p153, %p154
      %p156 = scmp.ne.s32.totalorder %s147, %s148
      %p157 = scmp.eq.s32.totalorder %s27, 0
      %p158 = por %p156, %p157
      %p159 = scmp.ne.s32.totalorder %s147, %s148
      %p160 = scmp.eq.s32.totalorder %s28, 3
      %p161 = por %p159, %p160
      %p163 = scmp.ne.s32.totalorder %s148, %s162
      %p164 = scmp.eq.s32.totalorder %s28, 0
      %p165 = por %p163, %p164
      %s166 = ssub.s32 %s22, %s29
      %p167 = scmp.eq.s32.totalorder %s166, 0
      %s169 = sadd.s32 %s168, 1
      %s170 = scalar_select %p167, %s168, %s169
      %p173 = pneg %p167
      %p174 = scmp.eq.s32.totalorder %s22, 3
      %p175 = por %p173, %p174
      %p176 = scmp.ne.s32.totalorder %s168, %s171
      %p177 = scmp.eq.s32.totalorder %s22, 0
      %p178 = por %p176, %p177
      %p179 = scmp.ne.s32.totalorder %s168, %s171
      %p180 = scmp.eq.s32.totalorder %s27, 3
      %p181 = por %p179, %p180
      %p182 = scmp.ne.s32.totalorder %s171, %s172
      %p183 = scmp.eq.s32.totalorder %s27, 0
      %p184 = por %p182, %p183
      %p185 = scmp.ne.s32.totalorder %s171, %s172
      %p186 = scmp.eq.s32.totalorder %s28, 3
      %p187 = por %p185, %p186
      %p189 = scmp.ne.s32.totalorder %s172, %s188
      %p190 = scmp.eq.s32.totalorder %s28, 0
      %p191 = por %p189, %p190
      %p192 = scmp.le.s32.totalorder 1, %s22
      %p193 = scmp.lt.s32.totalorder %s22, 5
      %p194 = pnand %p192, %p193
      %p195 = pneg %p194
      // Predicated region
      $region9: #{tpu_custom_call.1} parent=5 // pred_check
        _
      $region10: #{tpu_custom_call.1} parent=5 // pred_check_branch
        %197 = sbr.rel (%p194) target = $region12
      $region11: #{tpu_custom_call.1} parent=5 // pred_region
        %s198 = ssub.s32 %s22, 1
        // Predicated region
        $region13: #{tpu_custom_call.1} parent=11 // pred_check
          %p199 = pneg %p95
        $region14: #{tpu_custom_call.1} parent=11 // pred_check_branch
          %201 = sbr.rel (%p199) target = $region16
        $region15: #{tpu_custom_call.1} parent=11 // pred_region
          %203 = vsyncadd [#allocation6], 0
          %s204 = sshll.u32 %s2, 4
          %s205 = int_to_ptr.hbm [resolvable:$true] %s204
          %s206 = sshll.u32 [#allocation7], 4
          %s207 = int_to_ptr.vmem [resolvable:$true] %s206
          %212 = dma.hbm_to_vmem [thread:$0]  %s205, 1024, %s207, [#allocation6], 128, 128, 8
        $region16: #{tpu_custom_call.1} parent=11 // pred_fallthru
          _
        // Predicated region
        $region17: #{tpu_custom_call.1} parent=11 // pred_check
          %p213 = pneg %p116
        $region18: #{tpu_custom_call.1} parent=11 // pred_check_branch
          %215 = sbr.rel (%p213) target = $region20
        $region19: #{tpu_custom_call.1} parent=11 // pred_region
          _
        $region20: #{tpu_custom_call.1} parent=11 // pred_fallthru
          _
        // Predicated region
        $region21: #{tpu_custom_call.1} parent=11 // pred_check
          %p216 = pneg %p137
        $region22: #{tpu_custom_call.1} parent=11 // pred_check_branch
          %218 = sbr.rel (%p216) target = $region24
        $region23: #{tpu_custom_call.1} parent=11 // pred_region
          %220 = vsyncadd [#allocation9], 0
          %s221 = sshll.u32 %s4, 4
          %s222 = int_to_ptr.hbm [resolvable:$true] %s221
          %s223 = sshll.u32 [#allocation8], 4
          %s224 = int_to_ptr.vmem [resolvable:$true] %s223
          %229 = dma.hbm_to_vmem [thread:$0]  %s222, 1024, %s224, [#allocation9], 64, 64, 4
        $region24: #{tpu_custom_call.1} parent=11 // pred_fallthru
          _
        // Predicated region
        $region25: #{tpu_custom_call.1} parent=11 // pred_check
          %p230 = pneg %p158
        $region26: #{tpu_custom_call.1} parent=11 // pred_check_branch
          %232 = sbr.rel (%p230) target = $region28
        $region27: #{tpu_custom_call.1} parent=11 // pred_region
          _
        $region28: #{tpu_custom_call.1} parent=11 // pred_fallthru
          _
      $region12: #{tpu_custom_call.1} parent=5 // pred_fallthru
        _
      %p233 = scmp.lt.s32.totalorder %s22, 4
      // Predicated region
      $region29: #{tpu_custom_call.1} parent=5 // pred_check
        %p234 = pneg %p233
      $region30: #{tpu_custom_call.1} parent=5 // pred_check_branch
        %236 = sbr.rel (%p234) target = $region32
      $region31: #{tpu_custom_call.1} parent=5 // pred_region
        // Predicated region
        $region33: #{tpu_custom_call.1} parent=31 // pred_check
          %p237 = pneg %p42
        $region34: #{tpu_custom_call.1} parent=31 // pred_check_branch
          %239 = sbr.rel (%p237) target = $region36
        $region35: #{tpu_custom_call.1} parent=31 // pred_region
          %s240 = sand.u32 %s32, 1
          %s241 = scalar_lea.sflag [#allocation3], %s240
          %s242 = sand.u32 %s32, 1
          %s243 = smul.addr %s242, 16
          %s244 = scalar_lea.vmem [#allocation2], %s243
          %s245 = smul.u32 2, %s22
          %247 = vsyncadd %s241, 0
          %s248 = smul.addr %s245, 8
          %s249 = scalar_lea.hbm %s0, %s248
          %s250 = sshll.u32 %s249, 4
          %s251 = int_to_ptr.hbm [resolvable:$true] %s250
          %s252 = sshll.u32 %s244, 4
          %s253 = int_to_ptr.vmem [resolvable:$true] %s252
          %258 = dma.hbm_to_vmem [thread:$0]  %s251, 256, %s253, %s241, 128, 128, 8
        $region36: #{tpu_custom_call.1} parent=31 // pred_fallthru
          _
        // Predicated region
        $region37: #{tpu_custom_call.1} parent=31 // pred_check
          %p259 = pneg %p68
        $region38: #{tpu_custom_call.1} parent=31 // pred_check_branch
          %261 = sbr.rel (%p259) target = $region40
        $region39: #{tpu_custom_call.1} parent=31 // pred_region
          %s262 = sand.u32 %s22, 1
          %s263 = scalar_lea.sflag [#allocation6], %s262
          %s264 = sand.u32 %s58, 1
          %s265 = smul.addr %s264, 16
          %s266 = scalar_lea.vmem [#allocation5], %s265
          %s267 = smul.u32 2, %s22
          %269 = vsyncadd %s263, 0
          %s270 = smul.addr %s267, 8
          %s271 = scalar_lea.hbm %s1, %s270
          %s272 = sshll.u32 %s271, 4
          %s273 = int_to_ptr.hbm [resolvable:$true] %s272
          %s274 = sshll.u32 %s266, 4
          %s275 = int_to_ptr.vmem [resolvable:$true] %s274
          %280 = dma.hbm_to_vmem [thread:$0]  %s273, 256, %s275, %s263, 128, 128, 8
        $region40: #{tpu_custom_call.1} parent=31 // pred_fallthru
          _
      $region32: #{tpu_custom_call.1} parent=5 // pred_fallthru
        _
      %p281 = scmp.le.s32.totalorder 1, %s22
      %p282 = scmp.lt.s32.totalorder %s22, 5
      %p283 = pnand %p281, %p282
      %p284 = pneg %p283
      // Predicated region
      $region41: #{tpu_custom_call.1} parent=5 // pred_check
        _
      $region42: #{tpu_custom_call.1} parent=5 // pred_check_branch
        %286 = sbr.rel (%p283) target = $region44
      $region43: #{tpu_custom_call.1} parent=5 // pred_region
        %s287 = ssub.s32 %s22, 1
        %s288 = sand.u32 %s35, 1
        %s289 = scalar_lea.sflag [#allocation3], %s288
        %s290 = sand.u32 %s35, 1
        %s291 = smul.addr %s290, 16
        %s292 = scalar_lea.vmem [#allocation2], %s291
        // Predicated region
        $region45: #{tpu_custom_call.1} parent=43 // pred_check
          %p293 = pneg %p48
        $region46: #{tpu_custom_call.1} parent=43 // pred_check_branch
          %295 = sbr.rel (%p293) target = $region48
        $region47: #{tpu_custom_call.1} parent=43 // pred_region
          %297 = dma.done %s289, 256
        $region48: #{tpu_custom_call.1} parent=43 // pred_fallthru
          _
        %s298 = sand.u32 %s27, 1
        %s299 = scalar_lea.sflag [#allocation6], %s298
        %s300 = sand.u32 %s61, 1
        %s301 = smul.addr %s300, 16
        %s302 = scalar_lea.vmem [#allocation5], %s301
        // Predicated region
        $region49: #{tpu_custom_call.1} parent=43 // pred_check
          %p303 = pneg %p74
        $region50: #{tpu_custom_call.1} parent=43 // pred_check_branch
          %305 = sbr.rel (%p303) target = $region52
        $region51: #{tpu_custom_call.1} parent=43 // pred_region
          %307 = dma.done %s299, 256
        $region52: #{tpu_custom_call.1} parent=43 // pred_fallthru
          _
        // Predicated region
        $region53: #{tpu_custom_call.1} parent=43 // pred_check
          %p308 = pneg %p95
        $region54: #{tpu_custom_call.1} parent=43 // pred_check_branch
          %310 = sbr.rel (%p308) target = $region56
        $region55: #{tpu_custom_call.1} parent=43 // pred_region
          %312 = dma.done [#allocation6], 1024
        $region56: #{tpu_custom_call.1} parent=43 // pred_fallthru
          _
        // Predicated region
        $region57: #{tpu_custom_call.1} parent=43 // pred_check
          %p313 = pneg %p137
        $region58: #{tpu_custom_call.1} parent=43 // pred_check_branch
          %315 = sbr.rel (%p313) target = $region60
        $region59: #{tpu_custom_call.1} parent=43 // pred_region
          %317 = dma.done [#allocation9], 1024
        $region60: #{tpu_custom_call.1} parent=43 // pred_fallthru
          _
        %s318 = sand.u32 %s35, 1
        %s319 = scalar_lea.sflag [#allocation3], %s318
        %s320 = sand.u32 %s35, 1
        %s321 = smul.addr %s320, 16
        %s322 = scalar_lea.vmem [#allocation2], %s321
        %p323 = pneg %p48
        %p324 = pneg %p45
        %s325 = sand.u32 %s27, 1
        %s326 = scalar_lea.sflag [#allocation6], %s325
        %s327 = sand.u32 %s61, 1
        %s328 = smul.addr %s327, 16
        %s329 = scalar_lea.vmem [#allocation5], %s328
        %p330 = pneg %p74
        %p331 = pneg %p71
        %p332 = pneg %p95
        %p333 = pneg %p92
        %p334 = pneg %p116
        %p335 = pneg %p113
        %p336 = pneg %p137
        %p337 = pneg %p134
        %p338 = pneg %p158
        %p339 = pneg %p155
        %p340 = pneg %p184
        %p341 = pneg %p181
        %s342 = sand.u32 %s171, 1
        %s343 = scalar_lea.sflag [#allocation4], %s342
        %s344 = sand.u32 %s171, 1
        %s345 = smul.addr %s344, 16
        %s346 = scalar_lea.vmem [#allocation10], %s345
        %s347 = smul.u32 2, %s27
        %s348 = smul.u32 2, %s27
        %s349 = smul.u32 2, %s27
        %v351 = vld [vmem:[%s292] sm:$0xff]
        %v352 = vld [vmem:[%s292 + $0x8] sm:$0xff]
        %v353 = vld [vmem:[%s302] sm:$0xff]
        %v354 = vld [vmem:[%s302 + $0x8] sm:$0xff]
        %v355 = vpack.c.bf16 %v352, %v351
        %v356 = vpack.c.bf16 %v354, %v353
        %v357 = vld [vmem:[#allocation7] sm:$0xff]
        %v358 = vld [vmem:[#allocation7 + $0x8] sm:$0xff]
        %v359 = vld [vmem:[#allocation7 + $0x10] sm:$0xff]
        %v360 = vld [vmem:[#allocation7 + $0x18] sm:$0xff]
        %v361 = vld [vmem:[#allocation7 + $0x20] sm:$0xff]
        %v362 = vld [vmem:[#allocation7 + $0x28] sm:$0xff]
        %v363 = vld [vmem:[#allocation7 + $0x30] sm:$0xff]
        %v364 = vld [vmem:[#allocation7 + $0x38] sm:$0xff]
        %v373 = vunpack.c.l.b16 %v357
        %v374 = vunpack.c.h.b16 %v357
        %v375 = vunpack.c.l.b16 %v358
        %v376 = vunpack.c.h.b16 %v358
        %v377 = vunpack.c.l.b16 %v359
        %v378 = vunpack.c.h.b16 %v359
        %v379 = vunpack.c.l.b16 %v360
        %v380 = vunpack.c.h.b16 %v360
        %v381 = vunpack.c.l.b16 %v361
        %v382 = vunpack.c.h.b16 %v361
        %v383 = vunpack.c.l.b16 %v362
        %v384 = vunpack.c.h.b16 %v362
        %v385 = vunpack.c.l.b16 %v363
        %v386 = vunpack.c.h.b16 %v363
        %v387 = vunpack.c.l.b16 %v364
        %v388 = vunpack.c.h.b16 %v364
        %v389 = vpack.c.b16 %v375, %v373
        %v390 = vpack.c.b16 %v376, %v374
        %v391 = vpack.c.b16 %v379, %v377
        %v392 = vpack.c.b16 %v380, %v378
        %v393 = vpack.c.b16 %v383, %v381
        %v394 = vpack.c.b16 %v384, %v382
        %v395 = vpack.c.b16 %v387, %v385
        %v396 = vpack.c.b16 %v388, %v386
        %vm405 = vcmask 523264
        %v407 = vsel %vm405, %v355, 0
        %v410 = vsel %vm405, %v356, 0
        %412 = vmatpush.bf16.msra.mxu0 0
        %413 = vmatpush.bf16.msra.mxu0 0
        %414 = vmatpush.bf16.msra.mxu0 0
        %415 = vmatpush.bf16.msra.mxu0 0
        %416 = vmatpush.bf16.msra.mxu0 %v395
        %417 = vmatpush.bf16.msra.mxu0 %v393
        %418 = vmatpush.bf16.msra.mxu0 %v391
        %419 = vmatpush.bf16.msra.mxu0 %v389
        %420 = vmatmul.bf16.gmra.mxu0 %v407
        %v421 = vpop.f32.mrf.mxu0
        %v422 = vadd.f32 0.0, %v421
        %v423 = vpop.f32.mrf.mxu0
        %v424 = vadd.f32 0.0, %v423
        %425 = vmatmul.bf16.gmra.mxu0 %v410
        %v426 = vpop.f32.mrf.mxu0
        %v427 = vpop.f32.mrf.mxu0
        %428 = vdwg.mxu0
        %429 = vmatpush.bf16.msra.mxu0 0
        %430 = vmatpush.bf16.msra.mxu0 0
        %431 = vmatpush.bf16.msra.mxu0 0
        %432 = vmatpush.bf16.msra.mxu0 0
        %433 = vmatpush.bf16.msra.mxu0 %v396
        %434 = vmatpush.bf16.msra.mxu0 %v394
        %435 = vmatpush.bf16.msra.mxu0 %v392
        %436 = vmatpush.bf16.msra.mxu0 %v390
        %437 = vmatmul.bf16.gmra.mxu0 %v407
        %v438 = vpop.f32.mrf.mxu0
        %v439 = vpop.f32.mrf.mxu0
        %440 = vmatmul.bf16.gmra.mxu0 %v410
        %v441 = vpop.f32.mrf.mxu0
        %v442 = vadd.f32 0.0, %v441
        %v443 = vpop.f32.mrf.mxu0
        %v444 = vadd.f32 0.0, %v443
        %445 = vdwg.mxu0
        %v446 = vld [vmem:[%s3] sm:$0x1]
        %v448 = vperm.slane %v446, 0
        %v450 = vadd.f32 %v422, %v448
        %v451 = vadd.f32 %v424, %v448
        %v452 = vtanh.pop %v450
        %v453 = vtanh.pop %v451
        %v454 = vmul.f32 %v452, %v452
        %v455 = vmul.f32 %v453, %v453
        %v456 = vsub.f32 1.0, %v454
        %v457 = vsub.f32 1.0, %v455
        %v458 = vmul.f32 %v442, %v456
        %v459 = vmul.f32 %v444, %v457
        %v460 = vpack.c.bf16 %v453, %v452
        %v461 = vpack.c.bf16 %v459, %v458
        %v462 = vld [vmem:[#allocation8] sm:$0xf]
        %v463 = vld [vmem:[#allocation8 + $0x4] sm:$0xf]
        %v464 = vld [vmem:[#allocation8 + $0x8] sm:$0xf]
        %v465 = vld [vmem:[#allocation8 + $0xc] sm:$0xf]
        %v466 = vld [vmem:[#allocation8 + $0x10] sm:$0xf]
        %v467 = vld [vmem:[#allocation8 + $0x14] sm:$0xf]
        %v468 = vld [vmem:[#allocation8 + $0x18] sm:$0xf]
        %v469 = vld [vmem:[#allocation8 + $0x1c] sm:$0xf]
        %v470 = vld [vmem:[#allocation8 + $0x20] sm:$0xf]
        %v471 = vld [vmem:[#allocation8 + $0x24] sm:$0xf]
        %v472 = vld [vmem:[#allocation8 + $0x28] sm:$0xf]
        %v473 = vld [vmem:[#allocation8 + $0x2c] sm:$0xf]
        %v474 = vld [vmem:[#allocation8 + $0x30] sm:$0xf]
        %v475 = vld [vmem:[#allocation8 + $0x34] sm:$0xf]
        %v476 = vld [vmem:[#allocation8 + $0x38] sm:$0xf]
        %v477 = vld [vmem:[#allocation8 + $0x3c] sm:$0xf]
        %v494 = vunpack.c.l.b16 %v462
        %v495 = vunpack.c.l.b16 %v463
        %v496 = vunpack.c.l.b16 %v464
        %v497 = vunpack.c.l.b16 %v465
        %v498 = vunpack.c.l.b16 %v466
        %v499 = vunpack.c.l.b16 %v467
        %v500 = vunpack.c.l.b16 %v468
        %v501 = vunpack.c.l.b16 %v469
        %v502 = vunpack.c.l.b16 %v470
        %v503 = vunpack.c.l.b16 %v471
        %v504 = vunpack.c.l.b16 %v472
        %v505 = vunpack.c.l.b16 %v473
        %v506 = vunpack.c.l.b16 %v474
        %v507 = vunpack.c.l.b16 %v475
        %v508 = vunpack.c.l.b16 %v476
        %v509 = vunpack.c.l.b16 %v477
        %v510 = vpack.c.b16 %v495, %v494
        %v511 = vpack.c.b16 %v497, %v496
        %v512 = vpack.c.b16 %v499, %v498
        %v513 = vpack.c.b16 %v501, %v500
        %v514 = vpack.c.b16 %v503, %v502
        %v515 = vpack.c.b16 %v505, %v504
        %v516 = vpack.c.b16 %v507, %v506
        %v517 = vpack.c.b16 %v509, %v508
        %526 = vmatpush.bf16.msra.mxu0 %v517
        %527 = vmatpush.bf16.msra.mxu0 %v516
        %528 = vmatpush.bf16.msra.mxu0 %v515
        %529 = vmatpush.bf16.msra.mxu0 %v514
        %530 = vmatpush.bf16.msra.mxu0 %v513
        %531 = vmatpush.bf16.msra.mxu0 %v512
        %532 = vmatpush.bf16.msra.mxu0 %v511
        %533 = vmatpush.bf16.msra.mxu0 %v510
        %534 = vmatmul.bf16.gmra.mxu0 %v460
        %v535 = vpop.f32.mrf.mxu0
        %v536 = vadd.f32 0.0, %v535
        %v537 = vpop.f32.mrf.mxu0
        %v538 = vadd.f32 0.0, %v537
        %539 = vmatmul.bf16.gmra.mxu0 %v461
        %v540 = vpop.f32.mrf.mxu0
        %v541 = vadd.f32 0.0, %v540
        %v542 = vpop.f32.mrf.mxu0
        %v543 = vadd.f32 0.0, %v542
        %544 = vdwg.mxu0
        %v545 = vld [vmem:[%s5] sm:$0x1]
        %v547 = vperm.slane %v545, 0
        %v549 = vadd.f32 %v536, %v547
        %v550 = vadd.f32 %v538, %v547
        %553 = vrot.lane.b32.xlu0 %v353, 64
        %v554 = vpop.permute.xlu0 %553
        %555 = vrot.lane.b32.xlu0 %v354, 64
        %v556 = vpop.permute.xlu0 %555
        %v559 = vmul.f32 %v541, %v554
        %v560 = vmul.f32 %v543, %v556
        %563 = vrot.lane.b32.xlu0 %v559, 64
        %v564 = vpop.permute.xlu0 %563
        %565 = vrot.lane.b32.xlu0 %v560, 64
        %v566 = vpop.permute.xlu0 %565
        %v569 = vsel %vm405, %v564, 0.0
        %570 = vadd.xlane.f32.xlu0 %v569
        %v571 = vpop.xlane.xlu0 %570
        %v572 = vsel %vm405, %v566, 0.0
        %573 = vadd.xlane.f32.xlu0 %v572
        %v574 = vpop.xlane.xlu0 %573
        %v575 = vmul.f32 %v541, %v541
        %v576 = vmul.f32 %v543, %v543
        %579 = vrot.lane.b32.xlu0 %v575, 64
        %v580 = vpop.permute.xlu0 %579
        %581 = vrot.lane.b32.xlu0 %v576, 64
        %v582 = vpop.permute.xlu0 %581
        %v585 = vsel %vm405, %v580, 0.0
        %586 = vadd.xlane.f32.xlu0 %v585
        %v587 = vpop.xlane.xlu0 %586
        %v588 = vsel %vm405, %v582, 0.0
        %589 = vadd.xlane.f32.xlu0 %v588
        %v590 = vpop.xlane.xlu0 %589
        %v591 = vrcp.pop 64.0
        %v592 = vmul.f32 64.0, %v591
        %v593 = vsub.f32 1.0, %v592
        %v594 = vmul.f32 %v591, %v593
        %v595 = vadd.f32 %v591, %v594
        %vm596 = vweird.f32 %v591
        %v597 = vsel %vm596, %v591, %v595
        %v598 = vmul.f32 %v587, %v597
        %v599 = vmul.f32 %v590, %v597
        %600 = vst.msk [vmem:[%s346] sm:$0xff] %vm405, %v549
        %601 = vst.msk [vmem:[%s346 + $0x8] sm:$0xff] %vm405, %v550
        %v602 = vsub.f32 0.0, %v571
        %v603 = vsub.f32 0.0, %v574
        %vm604 = vcmask 531968
        %605 = vst.msk [vmem:[%s346] sm:$0xff] %vm604, %v602
        %606 = vst.msk [vmem:[%s346 + $0x8] sm:$0xff] %vm604, %v603
        %vm607 = vcmask 540168
        %608 = vst.msk [vmem:[%s346] sm:$0xff] %vm607, %v598
        %609 = vst.msk [vmem:[%s346 + $0x8] sm:$0xff] %vm607, %v599
        %vm610 = vcmask 1048080
        %611 = vst.msk [vmem:[%s346] sm:$0xff] %vm610, 0.0
        %612 = vst.msk [vmem:[%s346 + $0x8] sm:$0xff] %vm610, 0.0
        %s613 = sand.u32 %s171, 1
        %s614 = scalar_lea.sflag [#allocation4], %s613
        %s615 = sand.u32 %s171, 1
        %s616 = smul.addr %s615, 16
        %s617 = scalar_lea.vmem [#allocation10], %s616
        // Predicated region
        $region61: #{tpu_custom_call.1} parent=43 // pred_check
          %p618 = pneg %p181
        $region62: #{tpu_custom_call.1} parent=43 // pred_check_branch
          %620 = sbr.rel (%p618) target = $region64
        $region63: #{tpu_custom_call.1} parent=43 // pred_region
          %s621 = smul.u32 2, %s27
          %623 = vsyncadd %s614, 0
          %s624 = smul.addr %s621, 8
          %s625 = scalar_lea.hbm %s6, %s624
          %s626 = sshll.u32 %s617, 4
          %s627 = int_to_ptr.vmem [resolvable:$true] %s626
          %s628 = sshll.u32 %s625, 4
          %s629 = int_to_ptr.hbm [resolvable:$true] %s628
          %634 = dma.vmem_to_hbm [thread:$0]  %s627, 256, %s629, %s614, 128, 128, 8
        $region64: #{tpu_custom_call.1} parent=43 // pred_fallthru
          _
      $region44: #{tpu_custom_call.1} parent=5 // pred_fallthru
        _
      %p635 = scmp.le.s32.totalorder 2, %s22
      // Predicated region
      $region65: #{tpu_custom_call.1} parent=5 // pred_check
        %p636 = pneg %p635
      $region66: #{tpu_custom_call.1} parent=5 // pred_check_branch
        %638 = sbr.rel (%p636) target = $region68
      $region67: #{tpu_custom_call.1} parent=5 // pred_region
        %s639 = ssub.s32 %s22, 2
        // Predicated region
        $region69: #{tpu_custom_call.1} parent=67 // pred_check
          %p640 = pneg %p187
        $region70: #{tpu_custom_call.1} parent=67 // pred_check_branch
          %642 = sbr.rel (%p640) target = $region72
        $region71: #{tpu_custom_call.1} parent=67 // pred_region
          %s643 = sand.u32 %s172, 1
          %s644 = scalar_lea.sflag [#allocation4], %s643
          %s645 = sand.u32 %s172, 1
          %s646 = smul.addr %s645, 16
          %s647 = scalar_lea.vmem [#allocation10], %s646
          %649 = dma.done %s644, 256
        $region72: #{tpu_custom_call.1} parent=67 // pred_fallthru
          _
      $region68: #{tpu_custom_call.1} parent=5 // pred_fallthru
        _
    $region6: #{tpu_custom_call.1} parent=1 // loop_footer
      %s26 = sadd.s32 1, %s22
    $region7: #{tpu_custom_call.1} parent=1 // loop_footer_branch
      %21 = sbr.rel target = $region3
    $region8: #{tpu_custom_call.1} parent=1 // loop_exit
      _
    %650 = vsyncpa [#allocation3], 1
    %s651 = scalar_lea.sflag [#allocation3], 1
    %652 = vsyncpa %s651, 1
    %653 = vsyncpa [#allocation6], 1
    %s654 = scalar_lea.sflag [#allocation6], 1
    %655 = vsyncpa %s654, 1
    %656 = vsyncpa [#allocation9], 1
    %657 = vsyncpa [#allocation4], 1
    %s658 = scalar_lea.sflag [#allocation4], 1
    %659 = vsyncpa %s658, 1

</llo_original>
